<compile_context>
chip_gen: v7x
topology: tpu7x:2x2x1
jax: 0.10.0
libtpu: 0.0.40
codegen_flags: <defaults>
</compile_context>

<pallas_src>
import jax
import jax.numpy as jnp
from jax.experimental import pallas as pl
from jax.experimental.pallas import tpu as pltpu


# ---------------------------------------------------------------------------
# tile-size helper (full extent at toy sizes; divisor-based tiles at scale)
# ---------------------------------------------------------------------------
def _pick_node_tile(n, target=32):
    """Largest multiple-of-8 divisor of n not exceeding `target`; else n (full)."""
    if n <= target:
        return n
    for t in range(target, 7, -1):
        if n % t == 0 and t % 8 == 0:
            return t
    return n


# ---------------------------------------------------------------------------
# host-side one-time parameter packing
# ---------------------------------------------------------------------------
def _toeplitz_conv_weight(w, t_in):
    """(K, Cin, Cout) conv kernel -> dense (T_in*Cin, T_out*Cout) conv-as-matmul."""
    k_taps, _, _ = w.shape
    t_out = t_in - k_taps + 1
    return sum(jnp.kron(jnp.eye(t_in, t_out, k=-k, dtype=w.dtype), w[k])
               for k in range(k_taps))


def _fuse_timeblock_params(w1, w2, w3, b1, b2, b3, t_in):
    """Concatenate conv1/conv2/conv3 along the output lanes -> one matmul weight."""
    t_out = t_in - w1.shape[0] + 1
    w_big = jnp.concatenate(
        [_toeplitz_conv_weight(w, t_in) for w in (w1, w2, w3)], axis=1)
    b_big = jnp.concatenate([jnp.tile(b, (1, t_out)) for b in (b1, b2, b3)], axis=1)
    return w_big, b_big            # (T_in*Cin, 3*T_out*Cout), (1, 3*T_out*Cout)


# ---------------------------------------------------------------------------
# shared in-kernel TimeBlock math: ONE MXU matmul + relu(c1 + sigmoid(c2) + c3)
# ---------------------------------------------------------------------------
def _timeblock_matmul(x2d, w_ref, b_ref):
    # x2d: (rows, T_in*Cin); w: (T_in*Cin, 3*T_out*Cout); b: (1, 3*T_out*Cout)
    y = jnp.dot(x2d, w_ref[...], preferred_element_type=jnp.float32) + b_ref[...]
    wo = y.shape[1] // 3
    c1 = y[:, :wo]
    c2 = y[:, wo:2 * wo]
    c3 = y[:, 2 * wo:]
    return jnp.maximum(c1 + jax.nn.sigmoid(c2) + c3, 0.0)   # (rows, T_out*Cout)


# ---------------------------------------------------------------------------
# Kernel 1: TimeBlock1 + graph mixing (lfs = A_hat @ t1), fused, one batch/block
# ---------------------------------------------------------------------------
def _temporal_graph_kernel(x_ref, w_ref, b_ref, a_ref, o_ref):
    # x: (1, N, T*Cin); a: (N, N); o: (1, N, T1*Cout)
    t1 = _timeblock_matmul(x_ref[0], w_ref, b_ref)           # (N, T1*Cout), VMEM only
    lfs = jnp.dot(a_ref[...], t1, preferred_element_type=jnp.float32)
    o_ref[...] = lfs[None, :, :].astype(o_ref.dtype)


# ---------------------------------------------------------------------------
# Kernel 2: Theta (+ReLU) + TimeBlock2 + BatchNorm2d(num_nodes), fully fused
# ---------------------------------------------------------------------------
def _spatial_temporal_bn_kernel(x_ref, th_ref, w_ref, b_ref, g_ref, be_ref, o_ref):
    b, tn, w_in = x_ref.shape                                # (B, tile_n, T1*Cout)
    x2d = x_ref[...].reshape(b * tn, w_in)
    # graph-conv channel mixing: Theta applied per time step via block-diagonal matmul
    t2 = jnp.maximum(
        jnp.dot(x2d, th_ref[...], preferred_element_type=jnp.float32), 0.0)
    # second TimeBlock (conv-as-matmul); result stays in VMEM through BN
    t3 = _timeblock_matmul(t2, w_ref, b_ref)                 # (B*tile_n, T2*Cout)
    w_out = t3.shape[-1]
    t3 = t3.reshape(b, tn, w_out)
    # BatchNorm2d over the node axis: training-mode batch stats per node over (B,T2,C)
    cnt = b * w_out
    mean = jnp.sum(jnp.sum(t3, axis=2, keepdims=True), axis=0, keepdims=True) / cnt
    d = t3 - mean
    var = jnp.sum(jnp.sum(d * d, axis=2, keepdims=True), axis=0, keepdims=True) / cnt
    inv = jax.lax.rsqrt(var + 1e-5)
    gamma = g_ref[...][None, :, :]                           # (1, tile_n, 1)
    beta = be_ref[...][None, :, :]
    o_ref[...] = (d * inv * gamma + beta).astype(o_ref.dtype)


# ---------------------------------------------------------------------------
# Full STGCNBlock forward (Pallas kernels + pure reshapes, no transposes)
# ---------------------------------------------------------------------------
def stgcn_block(x, a_hat, params):
    B, N, T, cin = x.shape
    w11 = params["t1"][0]
    K = w11.shape[0]
    cout = w11.shape[2]
    T1 = T - K + 1
    T2 = T1 - K + 1

    w1_big, b1_big = _fuse_timeblock_params(*params["t1"], t_in=T)
    w2_big, b2_big = _fuse_timeblock_params(*params["t2"], t_in=T1)
    theta_bd = jnp.kron(jnp.eye(T1, dtype=x.dtype), params["theta"])

    tn = _pick_node_tile(N)
    n_tiles = N // tn
    w_t1 = T1 * cout          # lane width of the lfs intermediate
    w_out = T2 * cout         # lane width of the final output blocks

    # ---- kernel 1: TimeBlock1 + graph mixing (per batch) -----------------------
    x3 = x.reshape(B, N, T * cin)
    lfs = pl.pallas_call(
        _temporal_graph_kernel,
        out_shape=jax.ShapeDtypeStruct((B, N, w_t1), x.dtype),
        grid=(B,),
        in_specs=[
            pl.BlockSpec((1, N, T * cin), lambda b: (b, 0, 0)),
            pl.BlockSpec(w1_big.shape, lambda b: (0, 0)),
            pl.BlockSpec(b1_big.shape, lambda b: (0, 0)),
            pl.BlockSpec((N, N), lambda b: (0, 0)),
        ],
        out_specs=pl.BlockSpec((1, N, w_t1), lambda b: (b, 0, 0)),
        compiler_params=pltpu.CompilerParams(dimension_semantics=("parallel",)),
    )(x3, w1_big, b1_big, a_hat)

    # ---- kernel 2: Theta + ReLU + TimeBlock2 + BatchNorm2d(num_nodes) ----------
    out = pl.pallas_call(
        _spatial_temporal_bn_kernel,
        out_shape=jax.ShapeDtypeStruct((B, N, w_out), x.dtype),
        grid=(n_tiles,),
        in_specs=[
            pl.BlockSpec((B, tn, w_t1), lambda i: (0, i, 0)),
            pl.BlockSpec(theta_bd.shape, lambda i: (0, 0)),
            pl.BlockSpec(w2_big.shape, lambda i: (0, 0)),
            pl.BlockSpec(b2_big.shape, lambda i: (0, 0)),
            pl.BlockSpec((tn, 1), lambda i: (i, 0)),
            pl.BlockSpec((tn, 1), lambda i: (i, 0)),
        ],
        out_specs=pl.BlockSpec((B, tn, w_out), lambda i: (0, i, 0)),
        compiler_params=pltpu.CompilerParams(dimension_semantics=("parallel",)),
    )(lfs, theta_bd, w2_big, b2_big, params["gamma"], params["beta"])

    return out.reshape(B, N, T2, cout)


# ---------------------------------------------------------------------------
# Pure-JAX reference (high-precision matmuls) for the correctness check
# ---------------------------------------------------------------------------
_HP = jax.lax.Precision.HIGHEST


def _time_block_ref(x, w1, w2, w3, b1, b2, b3):
    K = w1.shape[0]
    T_out = x.shape[2] - K + 1

    def conv(w, b):
        acc = jnp.zeros(x.shape[:2] + (T_out, w.shape[2]), jnp.float32)
        for k in range(K):
            acc = acc + jnp.einsum("bntc,cd->bntd", x[:, :, k:k + T_out, :], w[k],
                                   precision=_HP)
        return acc + b[0]

    c1, c2, c3 = conv(w1, b1), conv(w2, b2), conv(w3, b3)
    return jax.nn.relu(c1 + jax.nn.sigmoid(c2) + c3)


def stgcn_block_ref(x, a_hat, params):
    t1 = _time_block_ref(x, *params["t1"])
    lfs = jnp.einsum("ij,bjtc->bitc", a_hat, t1, precision=_HP)
    t2 = jax.nn.relu(jnp.einsum("bitc,cd->bitd", lfs, params["theta"], precision=_HP))
    t3 = _time_block_ref(t2, *params["t2"])
    mean = jnp.mean(t3, axis=(0, 2, 3), keepdims=True)
    var = jnp.mean(jnp.square(t3 - mean), axis=(0, 2, 3), keepdims=True)
    g = params["gamma"].reshape(1, -1, 1, 1)
    b = params["beta"].reshape(1, -1, 1, 1)
    return (t3 - mean) * jax.lax.rsqrt(var + 1e-5) * g + b


# ---------------------------------------------------------------------------
# Deterministic parameters / inputs and smoke test
# ---------------------------------------------------------------------------
def make_params(key, in_channels, spatial_channels, out_channels, num_nodes, K=3):
    ks = jax.random.split(key, 16)

    def conv_params(k_w, k_b, cin, cout):
        bound = 1.0 / jnp.sqrt(jnp.float32(cin * K))
        w = jax.random.uniform(k_w, (K, cin, cout), jnp.float32, -bound, bound)
        b = jax.random.uniform(k_b, (1, cout), jnp.float32, -bound, bound)
        return w, b

    w11, b11 = conv_params(ks[0], ks[1], in_channels, out_channels)
    w12, b12 = conv_params(ks[2], ks[3], in_channels, out_channels)
    w13, b13 = conv_params(ks[4], ks[5], in_channels, out_channels)
    w21, b21 = conv_params(ks[6], ks[7], spatial_channels, out_channels)
    w22, b22 = conv_params(ks[8], ks[9], spatial_channels, out_channels)
    w23, b23 = conv_params(ks[10], ks[11], spatial_channels, out_channels)

    stdv = 1.0 / jnp.sqrt(jnp.float32(spatial_channels))
    theta = jax.random.uniform(ks[12], (out_channels, spatial_channels),
                               jnp.float32, -stdv, stdv)

    return {
        "t1": (w11, w12, w13, b11, b12, b13),
        "t2": (w21, w22, w23, b21, b22, b23),
        "theta": theta,
        "gamma": jnp.ones((num_nodes, 1), jnp.float32),
        "beta": jnp.zeros((num_nodes, 1), jnp.float32),
    }


if __name__ == "__main__":
    B, N, T = 2, 8, 12
    in_channels, spatial_channels, out_channels = 4, 16, 8

    key = jax.random.PRNGKey(0)
    kx, ka, kp = jax.random.split(key, 3)

    x = jax.random.normal(kx, (B, N, T, in_channels), jnp.float32)

    # a simple deterministic "normalized adjacency"
    a_raw = jnp.abs(jax.random.normal(ka, (N, N), jnp.float32)) + jnp.eye(N)
    a_hat = a_raw / jnp.sum(a_raw, axis=1, keepdims=True)

    params = make_params(kp, in_channels, spatial_channels, out_channels, N)

    out = jax.block_until_ready(stgcn_block(x, a_hat, params))
    ref = stgcn_block_ref(x, a_hat, params)

    assert out.shape == (B, N, T - 4, out_channels), out.shape
    err = float(jnp.max(jnp.abs(out - ref)))
    assert err < 1e-3, f"max abs error {err}"
    print("KERNEL_OK")
</pallas_src>

<mosaic_0001>
module attributes {stable_mosaic.version = 11 : i64} {
  func.func @_temporal_graph_kernel(%arg0: i32, %arg1: memref<1x8x48xf32, #tpu.memory_space<vmem>>, %arg2: memref<48x240xf32, #tpu.memory_space<vmem>>, %arg3: memref<1x240xf32, #tpu.memory_space<vmem>>, %arg4: memref<8x8xf32, #tpu.memory_space<vmem>>, %arg5: memref<1x8x80xf32, #tpu.memory_space<vmem>>) attributes {dimension_semantics = [#tpu.dimension_semantics<parallel>], iteration_bounds = array<i64: 2>, scalar_prefetch = 0 : i64, scratch_operands = 0 : i64, tpu.core_type = #tpu.core_type<tc>, window_params = [{transform_indices = @transform_0, window_bounds = array<i64: 1, 8, 48>}, {pipeline_mode = #tpu.pipeline_mode<synchronous>, transform_indices = @transform_1, window_bounds = array<i64: 48, 240>}, {pipeline_mode = #tpu.pipeline_mode<synchronous>, transform_indices = @transform_2, window_bounds = array<i64: 1, 240>}, {pipeline_mode = #tpu.pipeline_mode<synchronous>, transform_indices = @transform_3, window_bounds = array<i64: 8, 8>}, {transform_indices = @transform_4, window_bounds = array<i64: 1, 8, 80>}]} {
    %c0 = arith.constant 0 : index
    %c0_0 = arith.constant 0 : index
    %c0_1 = arith.constant 0 : index
    %0 = vector.load %arg1[%c0, %c0_0, %c0_1] : memref<1x8x48xf32, #tpu.memory_space<vmem>>, vector<1x8x48xf32>
    %1 = vector.shape_cast %0 : vector<1x8x48xf32> to vector<8x48xf32>
    %c0_2 = arith.constant 0 : index
    %c0_3 = arith.constant 0 : index
    %2 = vector.load %arg2[%c0_2, %c0_3] : memref<48x240xf32, #tpu.memory_space<vmem>>, vector<48x240xf32>
    %cst = arith.constant dense<0.000000e+00> : vector<8x240xf32>
    %3 = tpu.matmul %1, %2, %cst {dimension_numbers = #tpu.dot_dimension_numbers<[1], [0], [0], [1], [0, 0, 1, 1], [], []>} : vector<8x48xf32>, vector<48x240xf32>, vector<8x240xf32> -> vector<8x240xf32>
    %c0_4 = arith.constant 0 : index
    %c0_5 = arith.constant 0 : index
    %4 = vector.load %arg3[%c0_4, %c0_5] : memref<1x240xf32, #tpu.memory_space<vmem>>, vector<1x240xf32>
    %5 = vector.broadcast %4 : vector<1x240xf32> to vector<8x240xf32>
    %6 = arith.addf %3, %5 : vector<8x240xf32>
    %7 = vector.extract_strided_slice %6 {offsets = [0, 0], sizes = [8, 80], strides = [1, 1]} : vector<8x240xf32> to vector<8x80xf32>
    %8 = vector.extract_strided_slice %6 {offsets = [0, 80], sizes = [8, 80], strides = [1, 1]} : vector<8x240xf32> to vector<8x80xf32>
    %9 = vector.extract_strided_slice %6 {offsets = [0, 160], sizes = [8, 80], strides = [1, 1]} : vector<8x240xf32> to vector<8x80xf32>
    %10 = arith.negf %8 : vector<8x80xf32>
    %11 = math.exp %10 : vector<8x80xf32>
    %cst_6 = arith.constant 1.000000e+00 : f32
    %12 = vector.broadcast %cst_6 : f32 to vector<8x80xf32>
    %13 = arith.addf %12, %11 : vector<8x80xf32>
    %14 = arith.divf %12, %13 : vector<8x80xf32>
    %15 = arith.addf %7, %14 : vector<8x80xf32>
    %16 = arith.addf %15, %9 : vector<8x80xf32>
    %cst_7 = arith.constant 0.000000e+00 : f32
    %17 = vector.broadcast %cst_7 : f32 to vector<8x80xf32>
    %18 = arith.maximumf %16, %17 : vector<8x80xf32>
    %c0_8 = arith.constant 0 : index
    %c0_9 = arith.constant 0 : index
    %19 = vector.load %arg4[%c0_8, %c0_9] : memref<8x8xf32, #tpu.memory_space<vmem>>, vector<8x8xf32>
    %cst_10 = arith.constant dense<0.000000e+00> : vector<8x80xf32>
    %20 = tpu.matmul %19, %18, %cst_10 {dimension_numbers = #tpu.dot_dimension_numbers<[1], [0], [0], [1], [0, 0, 1, 1], [], []>} : vector<8x8xf32>, vector<8x80xf32>, vector<8x80xf32> -> vector<8x80xf32>
    %21 = vector.shape_cast %20 : vector<8x80xf32> to vector<1x8x80xf32>
    %c0_11 = arith.constant 0 : index
    %c0_12 = arith.constant 0 : index
    %c0_13 = arith.constant 0 : index
    %22 = vector.load %arg5[%c0_11, %c0_12, %c0_13] : memref<1x8x80xf32, #tpu.memory_space<vmem>>, vector<1x8x80xf32>
    tpu.vector_store %arg5[%c0_11, %c0_12, %c0_13], %21 {strides = array<i32>} : memref<1x8x80xf32, #tpu.memory_space<vmem>>, vector<1x8x80xf32>,
    return
  }
  func.func @transform_0(%arg0: i32) -> (i32, i32, i32) {
    %c0_i32 = arith.constant 0 : i32
    %c0_i32_0 = arith.constant 0 : i32
    %c0_i32_1 = arith.constant 0 : i32
    return %arg0, %c0_i32, %c0_i32_0 : i32, i32, i32
  }
  func.func @transform_1(%arg0: i32) -> (i32, i32) {
    %c0_i32 = arith.constant 0 : i32
    %c0_i32_0 = arith.constant 0 : i32
    %c0_i32_1 = arith.constant 0 : i32
    return %c0_i32, %c0_i32_0 : i32, i32
  }
  func.func @transform_2(%arg0: i32) -> (i32, i32) {
    %c0_i32 = arith.constant 0 : i32
    %c0_i32_0 = arith.constant 0 : i32
    %c0_i32_1 = arith.constant 0 : i32
    return %c0_i32, %c0_i32_0 : i32, i32
  }
  func.func @transform_3(%arg0: i32) -> (i32, i32) {
    %c0_i32 = arith.constant 0 : i32
    %c0_i32_0 = arith.constant 0 : i32
    %c0_i32_1 = arith.constant 0 : i32
    return %c0_i32, %c0_i32_0 : i32, i32
  }
  func.func @transform_4(%arg0: i32) -> (i32, i32, i32) {
    %c0_i32 = arith.constant 0 : i32
    %c0_i32_0 = arith.constant 0 : i32
    %c0_i32_1 = arith.constant 0 : i32
    return %arg0, %c0_i32, %c0_i32_0 : i32, i32, i32
  }
}

</mosaic_0001>

<llo_original>
// kernel: tpu_custom_call.1
$region0: #{tpu_custom_call.1}
  #allocation0 [shape = 'u32[]', space=smem, size = 0x4, offset = 0x4, fixed_abs, tag = 'smem constant byte address 0x4 - core index']
  #allocation1 [shape = 'u32[144,128]{1,0:T(1,128)}', space=vmem, size = 0x12000, scoped, tag = 'internal scratch']
  %s0 = inlined_call_operand.hbm [shape: f32[2,8,48], index: 0, kind: input, shape index: {}]
  %s1 = inlined_call_operand.hbm [shape: f32[48,240], index: 1, kind: input, shape index: {}]
  %s2 = inlined_call_operand.vmem [shape: f32[1,240], index: 2, kind: input, shape index: {}]
  %s3 = inlined_call_operand.vmem [shape: f32[8,8], index: 3, kind: input, shape index: {}]
  %s4 = inlined_call_operand.hbm [shape: f32[2,8,80], index: 4, kind: output, shape index: {}]
  %s5 = sld [smem:[#allocation0]]
  $region57: #{tpu_custom_call.1} parent=0
    _
  %s7 = ssub.s32 1, %s5
  %s8 = scalar_select 0, %s7, %s5
  $region1: #{tpu_custom_call.1} parent=0
    #allocation2 [shape = 'u8[8192]{0}', space=vmem, size = 0x2000, scoped, tag = 'input window, operand 0']
    #allocation3 [shape = 's32[2]{0}', space=sflag, size = 0x8, scoped, tag = 'scoped memory for tpu_custom_call.1']
    #allocation4 [shape = 's32[2]{0}', space=sflag, size = 0x8, scoped, tag = 'scoped memory for tpu_custom_call.1']
    #allocation5 [shape = 'u8[49152]{0}', space=vmem, size = 0xc000, scoped, tag = 'input window, operand 1, single buffered']
    #allocation6 [shape = 's32[1]{0}', space=sflag, size = 0x4, scoped, tag = 'scoped memory for tpu_custom_call.1']
    #allocation7 [shape = 'u8[8192]{0}', space=vmem, size = 0x2000, scoped, tag = 'output window, operand 0']
    %9 = vsyncpa [#allocation3], 0
    %s10 = scalar_lea.sflag [#allocation3], 1
    %11 = vsyncpa %s10, 0
    %12 = vsyncpa [#allocation6], 0
    %13 = vsyncpa [#allocation4], 0
    %s14 = scalar_lea.sflag [#allocation4], 1
    %15 = vsyncpa %s14, 0
    loop: start=0, step=1, limit=4
    $region2: #{tpu_custom_call.1} parent=1 // loop_pre_header
      _
    $region3: #{tpu_custom_call.1} parent=1 // loop_header
      %s17 = sphi 0, %s21
      %p18 = scmp.ge.s32.totalorder %s17, 4
      %s27 = sphi 0, %s29
      %s30 = sphi 0, %s27
      %s31 = sphi 0, %s30
      %s47 = sphi 0, %s31
      %s51 = sphi 0, %s51
      %s53 = sphi 0, %s51
      %s54 = sphi 0, %s53
      %s68 = sphi 0, %s54
      %s72 = sphi 0, %s72
      %s74 = sphi 0, %s72
      %s75 = sphi 0, %s74
      %s89 = sphi 0, %s75
      %s93 = sphi 0, %s93
      %s95 = sphi 0, %s93
      %s96 = sphi 0, %s95
      %s110 = sphi 0, %s96
      %s116 = sphi 0, %s118
      %s119 = sphi 0, %s116
      %s120 = sphi 0, %s119
      %s136 = sphi 0, %s120
    $region4: #{tpu_custom_call.1} parent=1 // loop_header_branch
      %20 = sbr.rel (%p18) target = $region8
    $region5: #{tpu_custom_call.1} parent=1 // loop_body
      %s22 = ssub.s32 %s17, 1
      %s23 = ssub.s32 %s17, 2
      %s24 = sadd.s32 %s17, 1
      %s25 = ssub.s32 %s17, %s24
      %p26 = scmp.eq.s32.totalorder %s25, 0
      %s28 = sadd.s32 %s27, 1
      %s29 = scalar_select %p26, %s27, %s28
      %p32 = pneg %p26
      %p33 = scmp.eq.s32.totalorder %s17, 1
      %p34 = por %p32, %p33
      %p35 = scmp.ne.s32.totalorder %s27, %s30
      %p36 = scmp.eq.s32.totalorder %s17, 0
      %p37 = por %p35, %p36
      %p38 = scmp.ne.s32.totalorder %s27, %s30
      %p39 = scmp.eq.s32.totalorder %s22, 1
      %p40 = por %p38, %p39
      %p41 = scmp.ne.s32.totalorder %s30, %s31
      %p42 = scmp.eq.s32.totalorder %s22, 0
      %p43 = por %p41, %p42
      %p44 = scmp.ne.s32.totalorder %s30, %s31
      %p45 = scmp.eq.s32.totalorder %s23, 1
      %p46 = por %p44, %p45
      %p48 = scmp.ne.s32.totalorder %s31, %s47
      %p49 = scmp.eq.s32.totalorder %s23, 0
      %p50 = por %p48, %p49
      %s52 = sadd.s32 %s51, 1
      %p55 = scmp.eq.s32.totalorder %s17, 1
      %p56 = scmp.ne.s32.totalorder %s51, %s53
      %p57 = scmp.eq.s32.totalorder %s17, 0
      %p58 = por %p56, %p57
      %p59 = scmp.ne.s32.totalorder %s51, %s53
      %p60 = scmp.eq.s32.totalorder %s22, 1
      %p61 = por %p59, %p60
      %p62 = scmp.ne.s32.totalorder %s53, %s54
      %p63 = scmp.eq.s32.totalorder %s22, 0
      %p64 = por %p62, %p63
      %p65 = scmp.ne.s32.totalorder %s53, %s54
      %p66 = scmp.eq.s32.totalorder %s23, 1
      %p67 = por %p65, %p66
      %p69 = scmp.ne.s32.totalorder %s54, %s68
      %p70 = scmp.eq.s32.totalorder %s23, 0
      %p71 = por %p69, %p70
      %s73 = sadd.s32 %s72, 1
      %p76 = scmp.eq.s32.totalorder %s17, 1
      %p77 = scmp.ne.s32.totalorder %s72, %s74
      %p78 = scmp.eq.s32.totalorder %s17, 0
      %p79 = por %p77, %p78
      %p80 = scmp.ne.s32.totalorder %s72, %s74
      %p81 = scmp.eq.s32.totalorder %s22, 1
      %p82 = por %p80, %p81
      %p83 = scmp.ne.s32.totalorder %s74, %s75
      %p84 = scmp.eq.s32.totalorder %s22, 0
      %p85 = por %p83, %p84
      %p86 = scmp.ne.s32.totalorder %s74, %s75
      %p87 = scmp.eq.s32.totalorder %s23, 1
      %p88 = por %p86, %p87
      %p90 = scmp.ne.s32.totalorder %s75, %s89
      %p91 = scmp.eq.s32.totalorder %s23, 0
      %p92 = por %p90, %p91
      %s94 = sadd.s32 %s93, 1
      %p97 = scmp.eq.s32.totalorder %s17, 1
      %p98 = scmp.ne.s32.totalorder %s93, %s95
      %p99 = scmp.eq.s32.totalorder %s17, 0
      %p100 = por %p98, %p99
      %p101 = scmp.ne.s32.totalorder %s93, %s95
      %p102 = scmp.eq.s32.totalorder %s22, 1
      %p103 = por %p101, %p102
      %p104 = scmp.ne.s32.totalorder %s95, %s96
      %p105 = scmp.eq.s32.totalorder %s22, 0
      %p106 = por %p104, %p105
      %p107 = scmp.ne.s32.totalorder %s95, %s96
      %p108 = scmp.eq.s32.totalorder %s23, 1
      %p109 = por %p107, %p108
      %p111 = scmp.ne.s32.totalorder %s96, %s110
      %p112 = scmp.eq.s32.totalorder %s23, 0
      %p113 = por %p111, %p112
      %s114 = ssub.s32 %s17, %s24
      %p115 = scmp.eq.s32.totalorder %s114, 0
      %s117 = sadd.s32 %s116, 1
      %s118 = scalar_select %p115, %s116, %s117
      %p121 = pneg %p115
      %p122 = scmp.eq.s32.totalorder %s17, 1
      %p123 = por %p121, %p122
      %p124 = scmp.ne.s32.totalorder %s116, %s119
      %p125 = scmp.eq.s32.totalorder %s17, 0
      %p126 = por %p124, %p125
      %p127 = scmp.ne.s32.totalorder %s116, %s119
      %p128 = scmp.eq.s32.totalorder %s22, 1
      %p129 = por %p127, %p128
      %p130 = scmp.ne.s32.totalorder %s119, %s120
      %p131 = scmp.eq.s32.totalorder %s22, 0
      %p132 = por %p130, %p131
      %p133 = scmp.ne.s32.totalorder %s119, %s120
      %p134 = scmp.eq.s32.totalorder %s23, 1
      %p135 = por %p133, %p134
      %p137 = scmp.ne.s32.totalorder %s120, %s136
      %p138 = scmp.eq.s32.totalorder %s23, 0
      %p139 = por %p137, %p138
      %p140 = scmp.le.s32.totalorder 1, %s17
      %p141 = scmp.lt.s32.totalorder %s17, 3
      %p142 = pnand %p140, %p141
      %p143 = pneg %p142
      // Predicated region
      $region9: #{tpu_custom_call.1} parent=5 // pred_check
        _
      $region10: #{tpu_custom_call.1} parent=5 // pred_check_branch
        %145 = sbr.rel (%p142) target = $region12
      $region11: #{tpu_custom_call.1} parent=5 // pred_region
        %s146 = ssub.s32 %s17, 1
        // Predicated region
        $region13: #{tpu_custom_call.1} parent=11 // pred_check
          %p147 = pneg %p64
        $region14: #{tpu_custom_call.1} parent=11 // pred_check_branch
          %149 = sbr.rel (%p147) target = $region16
        $region15: #{tpu_custom_call.1} parent=11 // pred_region
          %s151 = ssub.s32 1536, 1536
          %152 = vsyncadd [#allocation6], %s151
          %s153 = sshll.u32 [#allocation5], 4
          %s154 = int_to_ptr.vmem [resolvable:$true] %s153
          %159 = dma.hbm_to_vmem [thread:$0]  %s1, 1536, %s154, [#allocation6], 256, 256, 16
        $region16: #{tpu_custom_call.1} parent=11 // pred_fallthru
          _
        // Predicated region
        $region17: #{tpu_custom_call.1} parent=11 // pred_check
          %p160 = pneg %p85
        $region18: #{tpu_custom_call.1} parent=11 // pred_check_branch
          %162 = sbr.rel (%p160) target = $region20
        $region19: #{tpu_custom_call.1} parent=11 // pred_region
          _
        $region20: #{tpu_custom_call.1} parent=11 // pred_fallthru
          _
        // Predicated region
        $region21: #{tpu_custom_call.1} parent=11 // pred_check
          %p163 = pneg %p106
        $region22: #{tpu_custom_call.1} parent=11 // pred_check_branch
          %165 = sbr.rel (%p163) target = $region24
        $region23: #{tpu_custom_call.1} parent=11 // pred_region
          _
        $region24: #{tpu_custom_call.1} parent=11 // pred_fallthru
          _
      $region12: #{tpu_custom_call.1} parent=5 // pred_fallthru
        _
      %p166 = scmp.lt.s32.totalorder %s17, 2
      // Predicated region
      $region25: #{tpu_custom_call.1} parent=5 // pred_check
        %p167 = pneg %p166
      $region26: #{tpu_custom_call.1} parent=5 // pred_check_branch
        %169 = sbr.rel (%p167) target = $region28
      $region27: #{tpu_custom_call.1} parent=5 // pred_region
        // Predicated region
        $region29: #{tpu_custom_call.1} parent=27 // pred_check
          %p170 = pneg %p37
        $region30: #{tpu_custom_call.1} parent=27 // pred_check_branch
          %172 = sbr.rel (%p170) target = $region32
        $region31: #{tpu_custom_call.1} parent=27 // pred_region
          %s173 = sand.u32 %s27, 1
          %s174 = scalar_lea.sflag [#allocation3], %s173
          %s175 = sand.u32 %s27, 1
          %s176 = smul.addr %s175, 8
          %s177 = scalar_lea.vmem [#allocation2], %s176
          %s179 = ssub.s32 128, 128
          %180 = vsyncadd %s174, %s179
          %s181 = smul.addr %s17, 128
          %s182 = scalar_lea.hbm %s0, %s181
          %s184 = sshll.u32 %s177, 4
          %s185 = int_to_ptr.vmem [resolvable:$true] %s184
          %187 = dma.hbm_to_vmem [thread:$0]  %s182, 128, %s185, %s174
        $region32: #{tpu_custom_call.1} parent=27 // pred_fallthru
          _
      $region28: #{tpu_custom_call.1} parent=5 // pred_fallthru
        _
      %p188 = scmp.le.s32.totalorder 1, %s17
      %p189 = scmp.lt.s32.totalorder %s17, 3
      %p190 = pnand %p188, %p189
      %p191 = pneg %p190
      // Predicated region
      $region33: #{tpu_custom_call.1} parent=5 // pred_check
        _
      $region34: #{tpu_custom_call.1} parent=5 // pred_check_branch
        %193 = sbr.rel (%p190) target = $region36
      $region35: #{tpu_custom_call.1} parent=5 // pred_region
        %s194 = ssub.s32 %s17, 1
        %s195 = sand.u32 %s30, 1
        %s196 = scalar_lea.sflag [#allocation3], %s195
        %s197 = sand.u32 %s30, 1
        %s198 = smul.addr %s197, 8
        %s199 = scalar_lea.vmem [#allocation2], %s198
        // Predicated region
        $region37: #{tpu_custom_call.1} parent=35 // pred_check
          %p200 = pneg %p43
        $region38: #{tpu_custom_call.1} parent=35 // pred_check_branch
          %202 = sbr.rel (%p200) target = $region40
        $region39: #{tpu_custom_call.1} parent=35 // pred_region
          %203 = dma.done %s196, 128
        $region40: #{tpu_custom_call.1} parent=35 // pred_fallthru
          _
        // Predicated region
        $region41: #{tpu_custom_call.1} parent=35 // pred_check
          %p204 = pneg %p64
        $region42: #{tpu_custom_call.1} parent=35 // pred_check_branch
          %206 = sbr.rel (%p204) target = $region44
        $region43: #{tpu_custom_call.1} parent=35 // pred_region
          %207 = dma.done [#allocation6], 1536
        $region44: #{tpu_custom_call.1} parent=35 // pred_fallthru
          _
        %s208 = sand.u32 %s30, 1
        %s209 = scalar_lea.sflag [#allocation3], %s208
        %s210 = sand.u32 %s30, 1
        %s211 = smul.addr %s210, 8
        %s212 = scalar_lea.vmem [#allocation2], %s211
        %p213 = pneg %p43
        %p214 = pneg %p40
        %p215 = pneg %p64
        %p216 = pneg %p61
        %p217 = pneg %p85
        %p218 = pneg %p82
        %p219 = pneg %p106
        %p220 = pneg %p103
        %p221 = pneg %p132
        %p222 = pneg %p129
        %s223 = sand.u32 %s119, 1
        %s224 = scalar_lea.sflag [#allocation4], %s223
        %s225 = sand.u32 %s119, 1
        %s226 = smul.addr %s225, 8
        %s227 = scalar_lea.vmem [#allocation7], %s226
        %v228 = vld [vmem:[%s199] sm:$0xff]
        %v229 = vld [vmem:[#allocation5] sm:$0xff]
        %v230 = vld [vmem:[#allocation5 + $0x8] sm:$0xff]
        %v231 = vld [vmem:[#allocation5 + $0x10] sm:$0xff]
        %v232 = vld [vmem:[#allocation5 + $0x18] sm:$0xff]
        %v233 = vld [vmem:[#allocation5 + $0x20] sm:$0xff]
        %v234 = vld [vmem:[#allocation5 + $0x28] sm:$0xff]
        %v235 = vld [vmem:[#allocation5 + $0x30] sm:$0xff]
        %v236 = vld [vmem:[#allocation5 + $0x38] sm:$0xff]
        %v237 = vld [vmem:[#allocation5 + $0x40] sm:$0xff]
        %v238 = vld [vmem:[#allocation5 + $0x48] sm:$0xff]
        %v239 = vld [vmem:[#allocation5 + $0x50] sm:$0xff]
        %v240 = vld [vmem:[#allocation5 + $0x58] sm:$0xff]
        %v241 = vld [vmem:[%s2] sm:$0x3]
        %v243 = vlaneseq
        %v244 = vshrl.u32 %v243, 7
        %v245 = vsub.s32 0, %v244
        %v246 = vrot.slane %v241, %v245
        %v247 = vlaneseq
        %v248 = vshrl.u32 %v247, 7
        %v249 = vsub.s32 1, %v248
        %v250 = vrot.slane %v241, %v249
        %vm253 = vcmask 392192
        %v255 = vsel %vm253, %v228, 0
        %257 = vmatprep.subr.mxu0 %v230
        %258 = vmatpush1.msra.mxu0 %v229
        %259 = vmatprep.subr.mxu0 %v232
        %260 = vmatpush1.msra.mxu0 %v231
        %261 = vmatprep.subr.mxu0 %v234
        %262 = vmatpush1.msra.mxu0 %v233
        %263 = vmatprep.subr.mxu0 %v236
        %264 = vmatpush1.msra.mxu0 %v235
        %265 = vmatprep.subr.mxu0 %v238
        %266 = vmatpush1.msra.mxu0 %v237
        %267 = vmatprep.subr.mxu0 %v240
        %268 = vmatpush1.msra.mxu0 %v239
        %269 = vmatprep.subr.mxu0 0.0
        %270 = vmatpush1.msra.mxu0 0.0
        %271 = vmatprep.subr.mxu0 0.0
        %272 = vmatpush1.msra.mxu0 0.0
        %273 = vmatprep.subr.mxu0 0.0
        %274 = vmatpush1.msra.mxu0 0.0
        %275 = vmatprep.subr.mxu0 0.0
        %276 = vmatpush1.msra.mxu0 0.0
        %277 = vmatprep.subr.mxu0 0.0
        %278 = vmatpush1.msra.mxu0 0.0
        %279 = vmatprep.subr.mxu0 0.0
        %280 = vmatpush1.msra.mxu0 0.0
        %281 = vmatprep.subr.mxu0 0.0
        %282 = vmatpush1.msra.mxu0 0.0
        %283 = vmatprep.subr.mxu0 0.0
        %284 = vmatpush1.msra.mxu0 0.0
        %285 = vmatprep.subr.mxu0 0.0
        %286 = vmatpush1.msra.mxu0 0.0
        %287 = vmatprep.subr.mxu0 0.0
        %288 = vmatpush1.msra.mxu0 0.0
        %289 = vmatprep.subr.mxu0 0.0
        %290 = vmatpush1.msra.mxu0 0.0
        %291 = vmatprep.subr.mxu0 0.0
        %292 = vmatpush1.msra.mxu0 0.0
        %293 = vmatprep.subr.mxu0 0.0
        %294 = vmatpush1.msra.mxu0 0.0
        %295 = vmatprep.subr.mxu0 0.0
        %296 = vmatpush1.msra.mxu0 0.0
        %297 = vmatprep.subr.mxu0 0.0
        %298 = vmatpush1.msra.mxu0 0.0
        %299 = vmatprep.subr.mxu0 0.0
        %300 = vmatpush1.msra.mxu0 0.0
        %301 = vmatprep.subr.mxu0 0.0
        %302 = vmatpush1.msra.mxu0 0.0
        %303 = vmatprep.subr.mxu0 0.0
        %304 = vmatpush1.msra.mxu0 0.0
        %305 = vmatprep.subr.mxu0 0.0
        %306 = vmatpush1.msra.mxu0 0.0
        %307 = vmatprep.subr.mxu0 0.0
        %308 = vmatpush1.msra.mxu0 0.0
        %309 = vmatprep.subr.mxu0 0.0
        %310 = vmatpush1.msra.mxu0 0.0
        %311 = vmatprep.subr.mxu0 0.0
        %312 = vmatpush1.msra.mxu0 0.0
        %313 = vmatprep.subr.mxu0 0.0
        %314 = vmatpush1.msra.mxu0 0.0
        %315 = vmatprep.subr.mxu0 0.0
        %316 = vmatpush1.msra.mxu0 0.0
        %317 = vmatprep.subr.mxu0 0.0
        %318 = vmatpush1.msra.mxu0 0.0
        %319 = vmatprep.subr.mxu0 0.0
        %320 = vmatpush1.msra.mxu0 0.0
        %321 = vmatprep.mubr.f32.mxu0 0.0
        %322 = vmatmul.mubr.f32.gmra.mrb[0].mxu0 %v255
        %v323 = vpop.f32.mrb[0].mxu0
        %v324 = vadd.f32 %v246, %v323
        %v325 = vpop.f32.mrb[0].mxu0
        %v326 = vadd.f32 %v250, %v325
        %327 = vdwg.mxu0
        %v328 = vxor.u32 %v324, 2147483648
        %v329 = vxor.u32 %v326, 2147483648
        %v330 = vmul.f32 %v328, 1.442695
        %v331 = vpow.pop %v330
        %v332 = vmul.f32 %v329, 1.442695
        %v333 = vpow.pop %v332
        %v334 = vadd.f32 %v331, 1.0
        %v335 = vadd.f32 %v333, 1.0
        %v336 = vrcp.pop %v334
        %v337 = vmul.f32 1.0, %v336
        %v338 = vrcp.pop %v335
        %v339 = vmul.f32 1.0, %v338
        %342 = vrot.lane.b32.xlu0 %v337, 48
        %v343 = vpop.permute.xlu0 %342
        %344 = vrot.lane.b32.xlu0 %v339, 48
        %v345 = vpop.permute.xlu0 %344
        %v346 = vsel %vm253, %v343, %v345
        %v348 = vadd.f32 %v324, %v346
        %350 = vrot.lane.b32.xlu0 %v326, 96
        %v351 = vpop.permute.xlu0 %350
        %v353 = vadd.f32 %v348, %v351
        %v354 = vmax.f32 %v353, 0.0
        %v355 = vld [vmem:[%s3] sm:$0xff]
        %vm356 = vcmask 64512
        %v358 = vsel %vm356, %v355, 0
        %360 = vmatprep.subr.mxu0 0.0
        %361 = vmatpush1.msra.mxu0 %v354
        %362 = vmatprep.subr.mxu0 0.0
        %363 = vmatpush1.msra.mxu0 0.0
        %364 = vmatprep.subr.mxu0 0.0
        %365 = vmatpush1.msra.mxu0 0.0
        %366 = vmatprep.subr.mxu0 0.0
        %367 = vmatpush1.msra.mxu0 0.0
        %368 = vmatprep.subr.mxu0 0.0
        %369 = vmatpush1.msra.mxu0 0.0
        %370 = vmatprep.subr.mxu0 0.0
        %371 = vmatpush1.msra.mxu0 0.0
        %372 = vmatprep.subr.mxu0 0.0
        %373 = vmatpush1.msra.mxu0 0.0
        %374 = vmatprep.subr.mxu0 0.0
        %375 = vmatpush1.msra.mxu0 0.0
        %376 = vmatprep.subr.mxu0 0.0
        %377 = vmatpush1.msra.mxu0 0.0
        %378 = vmatprep.subr.mxu0 0.0
        %379 = vmatpush1.msra.mxu0 0.0
        %380 = vmatprep.subr.mxu0 0.0
        %381 = vmatpush1.msra.mxu0 0.0
        %382 = vmatprep.subr.mxu0 0.0
        %383 = vmatpush1.msra.mxu0 0.0
        %384 = vmatprep.subr.mxu0 0.0
        %385 = vmatpush1.msra.mxu0 0.0
        %386 = vmatprep.subr.mxu0 0.0
        %387 = vmatpush1.msra.mxu0 0.0
        %388 = vmatprep.subr.mxu0 0.0
        %389 = vmatpush1.msra.mxu0 0.0
        %390 = vmatprep.subr.mxu0 0.0
        %391 = vmatpush1.msra.mxu0 0.0
        %392 = vmatprep.subr.mxu0 0.0
        %393 = vmatpush1.msra.mxu0 0.0
        %394 = vmatprep.subr.mxu0 0.0
        %395 = vmatpush1.msra.mxu0 0.0
        %396 = vmatprep.subr.mxu0 0.0
        %397 = vmatpush1.msra.mxu0 0.0
        %398 = vmatprep.subr.mxu0 0.0
        %399 = vmatpush1.msra.mxu0 0.0
        %400 = vmatprep.subr.mxu0 0.0
        %401 = vmatpush1.msra.mxu0 0.0
        %402 = vmatprep.subr.mxu0 0.0
        %403 = vmatpush1.msra.mxu0 0.0
        %404 = vmatprep.subr.mxu0 0.0
        %405 = vmatpush1.msra.mxu0 0.0
        %406 = vmatprep.subr.mxu0 0.0
        %407 = vmatpush1.msra.mxu0 0.0
        %408 = vmatprep.subr.mxu0 0.0
        %409 = vmatpush1.msra.mxu0 0.0
        %410 = vmatprep.subr.mxu0 0.0
        %411 = vmatpush1.msra.mxu0 0.0
        %412 = vmatprep.subr.mxu0 0.0
        %413 = vmatpush1.msra.mxu0 0.0
        %414 = vmatprep.subr.mxu0 0.0
        %415 = vmatpush1.msra.mxu0 0.0
        %416 = vmatprep.subr.mxu0 0.0
        %417 = vmatpush1.msra.mxu0 0.0
        %418 = vmatprep.subr.mxu0 0.0
        %419 = vmatpush1.msra.mxu0 0.0
        %420 = vmatprep.subr.mxu0 0.0
        %421 = vmatpush1.msra.mxu0 0.0
        %422 = vmatprep.subr.mxu0 0.0
        %423 = vmatpush1.msra.mxu0 0.0
        %424 = vmatprep.mubr.f32.mxu0 0.0
        %425 = vmatmul.mubr.f32.gmra.mrb[0].mxu0 %v358
        %v426 = vpop.f32.mrb[0].mxu0
        %v427 = vadd.f32 0.0, %v426
        %v428 = vpop.f32.mrb[0].mxu0
        %429 = vdwg.mxu0
        %vm430 = vcmask 654336
        %431 = vst.msk [vmem:[%s227] sm:$0xff] %vm430, %v427
        %s432 = sand.u32 %s119, 1
        %s433 = scalar_lea.sflag [#allocation4], %s432
        %s434 = sand.u32 %s119, 1
        %s435 = smul.addr %s434, 8
        %s436 = scalar_lea.vmem [#allocation7], %s435
        // Predicated region
        $region45: #{tpu_custom_call.1} parent=35 // pred_check
          %p437 = pneg %p129
        $region46: #{tpu_custom_call.1} parent=35 // pred_check_branch
          %439 = sbr.rel (%p437) target = $region48
        $region47: #{tpu_custom_call.1} parent=35 // pred_region
          %s441 = ssub.s32 128, 128
          %442 = vsyncadd %s433, %s441
          %s443 = smul.addr %s22, 128
          %s444 = scalar_lea.hbm %s4, %s443
          %s446 = sshll.u32 %s436, 4
          %s447 = int_to_ptr.vmem [resolvable:$true] %s446
          %449 = dma.vmem_to_hbm [thread:$0]  %s447, 128, %s444, %s433
        $region48: #{tpu_custom_call.1} parent=35 // pred_fallthru
          _
      $region36: #{tpu_custom_call.1} parent=5 // pred_fallthru
        _
      %p450 = scmp.le.s32.totalorder 2, %s17
      // Predicated region
      $region49: #{tpu_custom_call.1} parent=5 // pred_check
        %p451 = pneg %p450
      $region50: #{tpu_custom_call.1} parent=5 // pred_check_branch
        %453 = sbr.rel (%p451) target = $region52
      $region51: #{tpu_custom_call.1} parent=5 // pred_region
        %s454 = ssub.s32 %s17, 2
        // Predicated region
        $region53: #{tpu_custom_call.1} parent=51 // pred_check
          %p455 = pneg %p135
        $region54: #{tpu_custom_call.1} parent=51 // pred_check_branch
          %457 = sbr.rel (%p455) target = $region56
        $region55: #{tpu_custom_call.1} parent=51 // pred_region
          %s458 = sand.u32 %s120, 1
          %s459 = scalar_lea.sflag [#allocation4], %s458
          %s460 = sand.u32 %s120, 1
          %s461 = smul.addr %s460, 8
          %s462 = scalar_lea.vmem [#allocation7], %s461
          %463 = dma.done %s459, 128
        $region56: #{tpu_custom_call.1} parent=51 // pred_fallthru
          _
      $region52: #{tpu_custom_call.1} parent=5 // pred_fallthru
        _
    $region6: #{tpu_custom_call.1} parent=1 // loop_footer
      %s21 = sadd.s32 1, %s17
    $region7: #{tpu_custom_call.1} parent=1 // loop_footer_branch
      %16 = sbr.rel target = $region3
    $region8: #{tpu_custom_call.1} parent=1 // loop_exit
      _
    %464 = vsyncpa [#allocation3], 1
    %s465 = scalar_lea.sflag [#allocation3], 1
    %466 = vsyncpa %s465, 1
    %467 = vsyncpa [#allocation6], 1
    %468 = vsyncpa [#allocation4], 1
    %s469 = scalar_lea.sflag [#allocation4], 1
    %470 = vsyncpa %s469, 1

</llo_original>
